<compile_context>
chip_gen: v5e
topology: v5e:2x2
jax: 0.10.0
libtpu: 0.0.40
codegen_flags: <defaults>
</compile_context>

<pallas_src>
import jax
import jax.numpy as jnp
from jax.experimental import pallas as pl
from jax.experimental.pallas import tpu as pltpu


def _mean_ensemble_kernel(*refs):
    # refs = (in_0, ..., in_{L-1}, out_ref); each ref is a (TR, C) VMEM tile.
    out_ref = refs[-1]
    in_refs = refs[:-1]
    inv_l = jnp.float32(1.0 / len(in_refs))      # fold the /L into one multiply
    acc = in_refs[0][...].astype(jnp.float32)
    for r in in_refs[1:]:
        acc = acc + r[...].astype(jnp.float32)
    out_ref[...] = (acc * inv_l).astype(out_ref.dtype)


def _divisors(n):
    ds = set()
    i = 1
    while i * i <= n:
        if n % i == 0:
            ds.add(i)
            ds.add(n // i)
        i += 1
    return ds


def _choose_layout(shape, itemsize, n_arrays):
    """Pick a lane-dense 2D view (R, C) and a row tile TR for the flat op."""
    total = 1
    for s in shape:
        total *= int(s)

    LANE = 128
    if total % LANE == 0:
        # Largest lane width (multiple of 128, up to 2048) dividing total.
        C = LANE
        for k in (16, 8, 4, 2, 1):
            if total % (LANE * k) == 0:
                C = LANE * k
                break
        R = total // C
    else:
        # Fall back to the original trailing dim (block last dim == full dim).
        C = int(shape[-1])
        R = total // C

    # Row tile: largest divisor of R that is a multiple of 8 (sublane) and
    # keeps double-buffered VMEM for all n_arrays tiles under ~12 MiB.
    vmem_budget = 12 * 1024 * 1024
    max_tile_bytes = max(vmem_budget // (2 * n_arrays), C * itemsize)
    max_rows = max(max_tile_bytes // (C * itemsize), 1)

    candidates = [d for d in _divisors(R) if d % 8 == 0 and d <= max_rows]
    TR = max(candidates) if candidates else R    # full block is always legal
    return R, C, TR


def mean_ensemble_block(dist_list):
    """Pallas equivalent of Mean_Ensemble_block.forward.

    dist_list: list of L arrays with identical shape/dtype.
    Returns a one-element list: [mean over the L arrays], matching
        torch.stack(dist_list, dim=-1).mean(-1, keepdim=False)
    """
    L = len(dist_list)
    assert L >= 1
    shape = dist_list[0].shape
    dtype = dist_list[0].dtype
    for x in dist_list:
        assert x.shape == shape and x.dtype == dtype

    itemsize = jnp.dtype(dtype).itemsize
    R, C, TR = _choose_layout(shape, itemsize, L + 1)

    # Pure element-wise op -> layout-preserving flatten to a lane-dense slab.
    flats = [x.reshape(R, C) for x in dist_list]

    spec = pl.BlockSpec((TR, C), lambda r: (r, 0))
    out = pl.pallas_call(
        _mean_ensemble_kernel,
        out_shape=jax.ShapeDtypeStruct((R, C), dtype),
        grid_spec=pltpu.PrefetchScalarGridSpec(
            num_scalar_prefetch=0,
            grid=(R // TR,),
            in_specs=[spec] * L,
            out_specs=spec,
        ),
        compiler_params=pltpu.CompilerParams(
            dimension_semantics=("parallel",)),
    )(*flats)
    return [out.reshape(shape)]


def _reference_forward(dist_list):
    """Pure-JAX reference of the same semantics, for verification."""
    return [jnp.stack(dist_list, axis=-1).mean(axis=-1)]


if __name__ == "__main__":
    # Shapes consistent with PatchAD dist tensors (b, n, d) and e_layers = L.
    B, N, D, L = 2, 8, 32, 3

    key = jax.random.PRNGKey(0)
    keys = jax.random.split(key, L)
    dist_list = [jax.random.normal(k, (B, N, D), dtype=jnp.float32)
                 for k in keys]

    (out,) = mean_ensemble_block(dist_list)
    out = jax.block_until_ready(out)

    # Sanity check against the pure-JAX reference.
    (ref,) = _reference_forward(dist_list)
    assert out.shape == (B, N, D)
    assert jnp.allclose(out, ref, atol=1e-5, rtol=1e-5)

    print("KERNEL_OK")
</pallas_src>

<mosaic_0001>
module attributes {stable_mosaic.version = 11 : i64} {
  func.func @_mean_ensemble_kernel(%arg0: i32, %arg1: memref<1x512xf32, #tpu.memory_space<vmem>>, %arg2: memref<1x512xf32, #tpu.memory_space<vmem>>, %arg3: memref<1x512xf32, #tpu.memory_space<vmem>>, %arg4: memref<1x512xf32, #tpu.memory_space<vmem>>) attributes {dimension_semantics = [#tpu.dimension_semantics<parallel>], iteration_bounds = array<i64: 1>, scalar_prefetch = 0 : i64, scratch_operands = 0 : i64, tpu.core_type = #tpu.core_type<tc>, window_params = [{transform_indices = @transform_0, window_bounds = array<i64: 1, 512>}, {transform_indices = @transform_1, window_bounds = array<i64: 1, 512>}, {transform_indices = @transform_2, window_bounds = array<i64: 1, 512>}, {transform_indices = @transform_3, window_bounds = array<i64: 1, 512>}]} {
    %c0 = arith.constant 0 : index
    %c0_0 = arith.constant 0 : index
    %0 = vector.load %arg1[%c0, %c0_0] : memref<1x512xf32, #tpu.memory_space<vmem>>, vector<1x512xf32>
    %c0_1 = arith.constant 0 : index
    %c0_2 = arith.constant 0 : index
    %1 = vector.load %arg2[%c0_1, %c0_2] : memref<1x512xf32, #tpu.memory_space<vmem>>, vector<1x512xf32>
    %2 = arith.addf %0, %1 : vector<1x512xf32>
    %c0_3 = arith.constant 0 : index
    %c0_4 = arith.constant 0 : index
    %3 = vector.load %arg3[%c0_3, %c0_4] : memref<1x512xf32, #tpu.memory_space<vmem>>, vector<1x512xf32>
    %4 = arith.addf %2, %3 : vector<1x512xf32>
    %cst = arith.constant 0.333333343 : f32
    %5 = vector.broadcast %cst : f32 to vector<1x512xf32>
    %6 = arith.mulf %4, %5 : vector<1x512xf32>
    %c0_5 = arith.constant 0 : index
    %c0_6 = arith.constant 0 : index
    %7 = vector.load %arg4[%c0_5, %c0_6] : memref<1x512xf32, #tpu.memory_space<vmem>>, vector<1x512xf32>
    tpu.vector_store %arg4[%c0_5, %c0_6], %6 {strides = array<i32>} : memref<1x512xf32, #tpu.memory_space<vmem>>, vector<1x512xf32>,
    return
  }
  func.func @transform_0(%arg0: i32) -> (i32, i32) {
    %c0_i32 = arith.constant 0 : i32
    %c0_i32_0 = arith.constant 0 : i32
    return %arg0, %c0_i32 : i32, i32
  }
  func.func @transform_1(%arg0: i32) -> (i32, i32) {
    %c0_i32 = arith.constant 0 : i32
    %c0_i32_0 = arith.constant 0 : i32
    return %arg0, %c0_i32 : i32, i32
  }
  func.func @transform_2(%arg0: i32) -> (i32, i32) {
    %c0_i32 = arith.constant 0 : i32
    %c0_i32_0 = arith.constant 0 : i32
    return %arg0, %c0_i32 : i32, i32
  }
  func.func @transform_3(%arg0: i32) -> (i32, i32) {
    %c0_i32 = arith.constant 0 : i32
    %c0_i32_0 = arith.constant 0 : i32
    return %arg0, %c0_i32 : i32, i32
  }
}

</mosaic_0001>

<llo_original>
// kernel: tpu_custom_call.1
$region0: #{tpu_custom_call.1}
  #allocation0 [shape = 'u32[]', space=smem, size = 0x4, offset = 0x4, fixed_abs, tag = 'smem constant byte address 0x4 - core index']
  #allocation1 [shape = 'u32[72,128]{1,0:T(1,128)}', space=vmem, size = 0x9000, scoped, tag = 'internal scratch']
  %s0 = inlined_call_operand.hbm [shape: f32[1,512], index: 0, kind: input, shape index: {}]
  %s1 = inlined_call_operand.hbm [shape: f32[1,512], index: 1, kind: input, shape index: {}]
  %s2 = inlined_call_operand.hbm [shape: f32[1,512], index: 2, kind: input, shape index: {}]
  %s3 = inlined_call_operand.hbm [shape: f32[1,512], index: 3, kind: output, shape index: {}]
  %s4 = sld [smem:[#allocation0]]
  $region34: #{tpu_custom_call.1} parent=0
    _
  %s6 = ssub.s32 1, %s4
  %s7 = scalar_select 0, %s6, %s4
  $region1: #{tpu_custom_call.1} parent=0
    #allocation2 [shape = 'u8[2048]{0}', space=vmem, size = 0x800, scoped, tag = 'input window, operand 0, single buffered']
    #allocation3 [shape = 's32[1]{0}', space=sflag, size = 0x4, scoped, tag = 'scoped memory for tpu_custom_call.1']
    #allocation4 [shape = 's32[1]{0}', space=sflag, size = 0x4, scoped, tag = 'scoped memory for tpu_custom_call.1']
    #allocation5 [shape = 'u8[2048]{0}', space=vmem, size = 0x800, scoped, tag = 'input window, operand 1, single buffered']
    #allocation6 [shape = 's32[1]{0}', space=sflag, size = 0x4, scoped, tag = 'scoped memory for tpu_custom_call.1']
    #allocation7 [shape = 'u8[2048]{0}', space=vmem, size = 0x800, scoped, tag = 'input window, operand 2, single buffered']
    #allocation8 [shape = 'u8[2048]{0}', space=vmem, size = 0x800, scoped, tag = 'output window, operand 0, single buffered']
    %8 = vsyncpa [#allocation3], 0
    %9 = vsyncpa [#allocation6], 0
    %10 = vsyncpa [#allocation4], 0
    // Predicated region
    $region2: #{tpu_custom_call.1} parent=1 // pred_check
      _
    $region3: #{tpu_custom_call.1} parent=1 // pred_check_branch
      %12 = sbr.rel (0) target = $region5
    $region4: #{tpu_custom_call.1} parent=1 // pred_region
      %14 = vsyncadd [#allocation3], 0
      %s16 = sshll.u32 %s0, 4
      %s17 = int_to_ptr.hbm [resolvable:$true] %s16
      %s18 = sshll.u32 [#allocation2], 4
      %s19 = int_to_ptr.vmem [resolvable:$true] %s18
      %21 = dma.hbm_to_vmem [thread:$0]  %s17, 64, %s19, [#allocation3]
    $region5: #{tpu_custom_call.1} parent=1 // pred_fallthru
      _
    // Predicated region
    $region6: #{tpu_custom_call.1} parent=1 // pred_check
      _
    $region7: #{tpu_custom_call.1} parent=1 // pred_check_branch
      %23 = sbr.rel (0) target = $region9
    $region8: #{tpu_custom_call.1} parent=1 // pred_region
      %25 = vsyncadd [#allocation6], 0
      %s27 = sshll.u32 %s1, 4
      %s28 = int_to_ptr.hbm [resolvable:$true] %s27
      %s29 = sshll.u32 [#allocation5], 4
      %s30 = int_to_ptr.vmem [resolvable:$true] %s29
      %32 = dma.hbm_to_vmem [thread:$0]  %s28, 64, %s30, [#allocation6]
    $region9: #{tpu_custom_call.1} parent=1 // pred_fallthru
      _
    // Predicated region
    $region10: #{tpu_custom_call.1} parent=1 // pred_check
      _
    $region11: #{tpu_custom_call.1} parent=1 // pred_check_branch
      %34 = sbr.rel (0) target = $region13
    $region12: #{tpu_custom_call.1} parent=1 // pred_region
      %36 = vsyncadd [#allocation6], 0
      %s38 = sshll.u32 %s2, 4
      %s39 = int_to_ptr.hbm [resolvable:$true] %s38
      %s40 = sshll.u32 [#allocation7], 4
      %s41 = int_to_ptr.vmem [resolvable:$true] %s40
      %43 = dma.hbm_to_vmem [thread:$0]  %s39, 64, %s41, [#allocation6]
    $region13: #{tpu_custom_call.1} parent=1 // pred_fallthru
      _
    // Predicated region
    $region14: #{tpu_custom_call.1} parent=1 // pred_check
      _
    $region15: #{tpu_custom_call.1} parent=1 // pred_check_branch
      %45 = sbr.rel (0) target = $region17
    $region16: #{tpu_custom_call.1} parent=1 // pred_region
      %47 = dma.done [#allocation3], 64
    $region17: #{tpu_custom_call.1} parent=1 // pred_fallthru
      _
    // Predicated region
    $region18: #{tpu_custom_call.1} parent=1 // pred_check
      _
    $region19: #{tpu_custom_call.1} parent=1 // pred_check_branch
      %49 = sbr.rel (0) target = $region21
    $region20: #{tpu_custom_call.1} parent=1 // pred_region
      %51 = dma.done [#allocation6], 64
    $region21: #{tpu_custom_call.1} parent=1 // pred_fallthru
      _
    // Predicated region
    $region22: #{tpu_custom_call.1} parent=1 // pred_check
      _
    $region23: #{tpu_custom_call.1} parent=1 // pred_check_branch
      %53 = sbr.rel (0) target = $region25
    $region24: #{tpu_custom_call.1} parent=1 // pred_region
      %55 = dma.done [#allocation6], 64
    $region25: #{tpu_custom_call.1} parent=1 // pred_fallthru
      _
    %v56 = vld [vmem:[#allocation2] sm:$0xf]
    %v57 = vld [vmem:[#allocation5] sm:$0xf]
    %v58 = vadd.f32 %v56, %v57
    %v59 = vld [vmem:[#allocation7] sm:$0xf]
    %v60 = vadd.f32 %v58, %v59
    %v61 = vmul.f32 %v60, 0.33333334
    %v62 = vlaneseq
    %vm63 = vcmp.ge.s32.totalorder %v62, 0
    %vm64 = vcmp.lt.s32.totalorder %v62, 512
    %vm65 = vmand %vm63, %vm64
    %66 = vst.msk [vmem:[#allocation8] sm:$0xf] %vm65, %v61
    // Predicated region
    $region26: #{tpu_custom_call.1} parent=1 // pred_check
      _
    $region27: #{tpu_custom_call.1} parent=1 // pred_check_branch
      %68 = sbr.rel (0) target = $region29
    $region28: #{tpu_custom_call.1} parent=1 // pred_region
      %70 = vsyncadd [#allocation4], 0
      %s72 = sshll.u32 [#allocation8], 4
      %s73 = int_to_ptr.vmem [resolvable:$true] %s72
      %s74 = sshll.u32 %s3, 4
      %s75 = int_to_ptr.hbm [resolvable:$true] %s74
      %77 = dma.vmem_to_hbm [thread:$0]  %s73, 64, %s75, [#allocation4]
    $region29: #{tpu_custom_call.1} parent=1 // pred_fallthru
      _
    // Predicated region
    $region30: #{tpu_custom_call.1} parent=1 // pred_check
      _
    $region31: #{tpu_custom_call.1} parent=1 // pred_check_branch
      %79 = sbr.rel (0) target = $region33
    $region32: #{tpu_custom_call.1} parent=1 // pred_region
      %81 = dma.done [#allocation4], 64
    $region33: #{tpu_custom_call.1} parent=1 // pred_fallthru
      _
    %82 = vsyncpa [#allocation3], 1
    %83 = vsyncpa [#allocation6], 1
    %84 = vsyncpa [#allocation4], 1

</llo_original>
